<compile_context>
chip_gen: v7x
topology: tpu7x:2x2x1
jax: 0.10.0
libtpu: 0.0.40
codegen_flags: <defaults>
</compile_context>

<pallas_src>
import math
import jax
import jax.numpy as jnp
from jax.experimental import pallas as pl
from jax.experimental.pallas import tpu as pltpu

LN_EPS = 1e-5


def align_kernel(s_mem_ref, t_mem_ref, s_hs_ref, t_hs_ref,
                 ws_ref, wt_ref, wm_ref, vec_ref, out_ref):
    B = s_mem_ref.shape[0]
    S = ws_ref.shape[0]          # s_embed_dim
    T = wt_ref.shape[0]          # t_embed_dim

    # ---- fused feature averaging (memories arrive pre-transposed to (B, L, D)) ----
    s_mem_avg = jnp.mean(s_mem_ref[...], axis=1)    # (B, S)
    t_mem_avg = jnp.mean(t_mem_ref[...], axis=1)    # (B, T)
    s_hs_avg = jnp.mean(s_hs_ref[...], axis=1)      # (B, S)
    t_hs_avg = jnp.mean(t_hs_ref[...], axis=1)      # (B, T)

    # packed vector-parameter slab rows: 0/1 linear bias (enc/dec), 2/3 LN gamma (enc/dec),
    # 4/5 LN beta (enc/dec), 6 match_proj bias (s lanes only).
    # Lanes [0:T] = t-branch params, lanes [T:T+S] = s-branch params.
    def vrow_t(r):
        return vec_ref[r:r + 1, 0:T]                # (1, T)

    def vrow_s(r):
        return vec_ref[r:r + 1, T:T + S]            # (1, S)

    def layernorm(x, g, b):
        mu = jnp.mean(x, axis=-1, keepdims=True)
        xc = x - mu
        var = jnp.mean(xc * xc, axis=-1, keepdims=True)
        return xc * jax.lax.rsqrt(var + LN_EPS) * g + b

    def dot_f32(x, w_ref):
        # bf16 weight storage (halved HBM->VMEM bytes); f32 activations & f32 accumulation.
        return jnp.dot(x, w_ref[...].astype(jnp.float32),
                       preferred_element_type=jnp.float32)

    # ---- fused dot #1: s-branch (encoder_proj_s | decoder_proj_s in one MXU pass) ----
    xs = jnp.concatenate([s_mem_avg, s_hs_avg], axis=0)            # (2B, S)
    ys = dot_f32(xs, ws_ref)                                       # (2B, 2S)
    s_memory_proj = layernorm(ys[0:B, 0:S] + vrow_s(0), vrow_s(2), vrow_s(4))
    s_hs_proj = layernorm(ys[B:2 * B, S:2 * S] + vrow_s(1), vrow_s(3), vrow_s(5))

    # ---- fused dot #2: t-branch (encoder_proj_t | decoder_proj_t) ----
    xt = jnp.concatenate([t_mem_avg, t_hs_avg], axis=0)            # (2B, T)
    yt = dot_f32(xt, wt_ref)                                       # (2B, 2T)
    t_memory_proj = layernorm(yt[0:B, 0:T] + vrow_t(0), vrow_t(2), vrow_t(4))
    t_hs_proj = layernorm(yt[B:2 * B, T:2 * T] + vrow_t(1), vrow_t(3), vrow_t(5))

    # ---- fused dot #3: shared match_proj over both t projections ----
    t_stack = jnp.concatenate([t_memory_proj, t_hs_proj], axis=0)  # (2B, T)
    ym = dot_f32(t_stack, wm_ref) + vrow_s(6)                      # (2B, S)

    # ---- stacked MSE: rows [0:B] -> enc_loss, rows [B:2B] -> dec_loss ----
    s_stack = jnp.concatenate([s_memory_proj, s_hs_proj], axis=0)  # (2B, S)
    d = s_stack - ym
    row_sums = jnp.sum(d * d, axis=1, keepdims=True)               # (2B, 1)
    inv_n = 1.0 / (B * S)
    enc_loss = jnp.sum(row_sums[0:B, :]) * inv_n
    dec_loss = jnp.sum(row_sums[B:2 * B, :]) * inv_n

    # single lane-dense output row: lane 0 = enc, lane 1 = dec
    lane = jax.lax.broadcasted_iota(jnp.int32, out_ref.shape, 1)
    out_ref[...] = jnp.where(lane == 0, enc_loss,
                             jnp.where(lane == 1, dec_loss, 0.0)).astype(out_ref.dtype)


@jax.jit
def alignment_forward(s_memory, t_memory, s_hs, t_hs, packed):
    """Fused Pallas forward. Memories are (L, B, D) like the torch module; returns scalars."""
    s_mem = jnp.swapaxes(s_memory, 0, 1)   # (B, L, S): makes every mean an axis=1 reduction
    t_mem = jnp.swapaxes(t_memory, 0, 1)   # (B, L, T)
    vmem = pl.BlockSpec(memory_space=pltpu.MemorySpace.VMEM)
    out = pl.pallas_call(
        align_kernel,
        out_shape=jax.ShapeDtypeStruct((1, 128), jnp.float32),
        in_specs=[vmem] * 8,
        out_specs=vmem,
        compiler_params=pltpu.CompilerParams(vmem_limit_bytes=16 << 20),
    )(s_mem, t_mem, s_hs, t_hs, packed['ws'], packed['wt'], packed['wm'], packed['vec'])
    return out[0, 0], out[0, 1]


def pack_params(raw):
    """One-time packing (hoisted out of the per-call path):
    5 weights -> 3 bf16 slabs in the concat layout the fused dots need,
    13 bias/gamma/beta vectors -> 1 (8, T+S) f32 slab."""
    bf = jnp.bfloat16
    S = raw['w_es'].shape[0]
    T = raw['w_et'].shape[0]
    ws = jnp.concatenate([raw['w_es'], raw['w_ds']], axis=1).astype(bf)   # (S, 2S)
    wt = jnp.concatenate([raw['w_et'], raw['w_dt']], axis=1).astype(bf)   # (T, 2T)
    wm = raw['w_m'].astype(bf)                                            # (T, S)

    vec = jnp.zeros((8, T + S), jnp.float32)
    t_rows = ['b_et', 'b_dt', 'g_et', 'g_dt', 'be_et', 'be_dt']
    s_rows = ['b_es', 'b_ds', 'g_es', 'g_ds', 'be_es', 'be_ds', 'b_m']
    for r, name in enumerate(t_rows):
        vec = vec.at[r, 0:T].set(jnp.reshape(raw[name], (-1,)))
    for r, name in enumerate(s_rows):
        vec = vec.at[r, T:T + S].set(jnp.reshape(raw[name], (-1,)))
    return {'ws': ws, 'wt': wt, 'wm': wm, 'vec': vec}


def alignment_reference(s_memory, t_memory, s_hs, t_hs, params):
    """Pure-JAX reference mirroring the PyTorch forward (all f32)."""
    def linear(x, w, b):
        return x @ w + b

    def ln(x, g, be):
        mu = jnp.mean(x, axis=-1, keepdims=True)
        var = jnp.mean((x - mu) ** 2, axis=-1, keepdims=True)
        return (x - mu) / jnp.sqrt(var + LN_EPS) * g + be

    s_mem_avg = s_memory.mean(axis=0)
    t_mem_avg = t_memory.mean(axis=0)
    s_hs_avg = s_hs.mean(axis=1)
    t_hs_avg = t_hs.mean(axis=1)

    s_memory_proj = ln(linear(s_mem_avg, params['w_es'], params['b_es']),
                       params['g_es'], params['be_es'])
    t_memory_proj = ln(linear(t_mem_avg, params['w_et'], params['b_et']),
                       params['g_et'], params['be_et'])
    t_memory_proj = linear(t_memory_proj, params['w_m'], params['b_m'])
    s_hs_proj = ln(linear(s_hs_avg, params['w_ds'], params['b_ds']),
                   params['g_ds'], params['be_ds'])
    t_hs_proj = ln(linear(t_hs_avg, params['w_dt'], params['b_dt']),
                   params['g_dt'], params['be_dt'])
    t_hs_proj = linear(t_hs_proj, params['w_m'], params['b_m'])

    enc_loss = jnp.mean((s_memory_proj - t_memory_proj) ** 2)
    dec_loss = jnp.mean((s_hs_proj - t_hs_proj) ** 2)
    return enc_loss, dec_loss


def init_params(key, s_dim, t_dim):
    # torch nn.Linear-style uniform(+/- 1/sqrt(fan_in)); LayerNorm affine perturbed
    # slightly from (1, 0) so the affine path is exercised by the test.
    specs = [('w_es', 'b_es', 'g_es', 'be_es', s_dim, s_dim),
             ('w_ds', 'b_ds', 'g_ds', 'be_ds', s_dim, s_dim),
             ('w_et', 'b_et', 'g_et', 'be_et', t_dim, t_dim),
             ('w_dt', 'b_dt', 'g_dt', 'be_dt', t_dim, t_dim)]
    keys = iter(jax.random.split(key, 4 * len(specs) + 2))
    params = {}
    for wn, bn, gn, ben, fi, fo in specs:
        bound = 1.0 / math.sqrt(fi)
        params[wn] = jax.random.uniform(next(keys), (fi, fo), jnp.float32, -bound, bound)
        params[bn] = jax.random.uniform(next(keys), (1, fo), jnp.float32, -bound, bound)
        params[gn] = 1.0 + 0.1 * jax.random.uniform(next(keys), (1, fo), jnp.float32, -1.0, 1.0)
        params[ben] = 0.1 * jax.random.uniform(next(keys), (1, fo), jnp.float32, -1.0, 1.0)
    bound = 1.0 / math.sqrt(t_dim)
    params['w_m'] = jax.random.uniform(next(keys), (t_dim, s_dim), jnp.float32, -bound, bound)
    params['b_m'] = jax.random.uniform(next(keys), (1, s_dim), jnp.float32, -bound, bound)
    return params


if __name__ == "__main__":
    key = jax.random.PRNGKey(0)
    kp, k1, k2, k3, k4 = jax.random.split(key, 5)

    B, S_LEN, T_LEN = 2, 8, 8        # batch, memory length, hidden-state length
    S_DIM, T_DIM = 128, 256          # s_embed_dim, t_embed_dim (lane-aligned)

    raw = init_params(kp, S_DIM, T_DIM)
    packed = pack_params(raw)        # one-time slab packing + bf16 weight cast

    # memories are (seq, batch, dim) -> mean(dim=0); hidden states are (batch, seq, dim) -> mean(dim=1)
    s_memory = jax.random.normal(k1, (S_LEN, B, S_DIM), jnp.float32)
    t_memory = jax.random.normal(k2, (S_LEN, B, T_DIM), jnp.float32)
    s_hs = jax.random.normal(k3, (B, T_LEN, S_DIM), jnp.float32)
    t_hs = jax.random.normal(k4, (B, T_LEN, T_DIM), jnp.float32)

    enc_loss, dec_loss = alignment_forward(s_memory, t_memory, s_hs, t_hs, packed)
    enc_loss = jax.block_until_ready(enc_loss)
    dec_loss = jax.block_until_ready(dec_loss)

    # reference uses the same bf16-rounded weight values; kernel activations / LN / bias
    # stay f32, so the remaining gap is only matmul precision + reduction order.
    ref_params = dict(raw)
    for k in ('w_es', 'w_ds', 'w_et', 'w_dt', 'w_m'):
        ref_params[k] = raw[k].astype(jnp.bfloat16).astype(jnp.float32)
    enc_ref, dec_ref = alignment_reference(s_memory, t_memory, s_hs, t_hs, ref_params)

    assert jnp.isfinite(enc_loss) and jnp.isfinite(dec_loss), "non-finite loss from kernel"
    assert abs(float(enc_loss) - float(enc_ref)) < 1e-2 * max(1.0, abs(float(enc_ref))), (
        f"enc mismatch: pallas={float(enc_loss)} ref={float(enc_ref)}")
    assert abs(float(dec_loss) - float(dec_ref)) < 1e-2 * max(1.0, abs(float(dec_ref))), (
        f"dec mismatch: pallas={float(dec_loss)} ref={float(dec_ref)}")
    print("KERNEL_OK")
</pallas_src>

<mosaic_0001>
module attributes {stable_mosaic.version = 11 : i64} {
  func.func @align_kernel(%arg0: memref<2x8x128xf32, #tpu.memory_space<vmem>>, %arg1: memref<2x8x256xf32, #tpu.memory_space<vmem>>, %arg2: memref<2x8x128xf32, #tpu.memory_space<vmem>>, %arg3: memref<2x8x256xf32, #tpu.memory_space<vmem>>, %arg4: memref<128x256xbf16, #tpu.memory_space<vmem>>, %arg5: memref<256x512xbf16, #tpu.memory_space<vmem>>, %arg6: memref<256x128xbf16, #tpu.memory_space<vmem>>, %arg7: memref<8x384xf32, #tpu.memory_space<vmem>>, %arg8: memref<1x128xf32, #tpu.memory_space<vmem>>) attributes {dimension_semantics = [], scalar_prefetch = 0 : i64, scratch_operands = 0 : i64, tpu.core_type = #tpu.core_type<tc>} {
    %c0 = arith.constant 0 : index
    %c0_0 = arith.constant 0 : index
    %c0_1 = arith.constant 0 : index
    %0 = vector.load %arg0[%c0, %c0_0, %c0_1] : memref<2x8x128xf32, #tpu.memory_space<vmem>>, vector<2x8x128xf32>
    %cst = arith.constant dense<0.000000e+00> : vector<2x128xf32>
    %1 = vector.multi_reduction <add>, %0, %cst [1] : vector<2x8x128xf32> to vector<2x128xf32>
    %cst_2 = arith.constant 8.000000e+00 : f32
    %2 = vector.broadcast %cst_2 : f32 to vector<2x128xf32>
    %3 = arith.divf %1, %2 : vector<2x128xf32>
    %c0_3 = arith.constant 0 : index
    %c0_4 = arith.constant 0 : index
    %c0_5 = arith.constant 0 : index
    %4 = vector.load %arg1[%c0_3, %c0_4, %c0_5] : memref<2x8x256xf32, #tpu.memory_space<vmem>>, vector<2x8x256xf32>
    %cst_6 = arith.constant dense<0.000000e+00> : vector<2x256xf32>
    %5 = vector.multi_reduction <add>, %4, %cst_6 [1] : vector<2x8x256xf32> to vector<2x256xf32>
    %cst_7 = arith.constant 8.000000e+00 : f32
    %6 = vector.broadcast %cst_7 : f32 to vector<2x256xf32>
    %7 = arith.divf %5, %6 : vector<2x256xf32>
    %c0_8 = arith.constant 0 : index
    %c0_9 = arith.constant 0 : index
    %c0_10 = arith.constant 0 : index
    %8 = vector.load %arg2[%c0_8, %c0_9, %c0_10] : memref<2x8x128xf32, #tpu.memory_space<vmem>>, vector<2x8x128xf32>
    %cst_11 = arith.constant dense<0.000000e+00> : vector<2x128xf32>
    %9 = vector.multi_reduction <add>, %8, %cst_11 [1] : vector<2x8x128xf32> to vector<2x128xf32>
    %cst_12 = arith.constant 8.000000e+00 : f32
    %10 = vector.broadcast %cst_12 : f32 to vector<2x128xf32>
    %11 = arith.divf %9, %10 : vector<2x128xf32>
    %c0_13 = arith.constant 0 : index
    %c0_14 = arith.constant 0 : index
    %c0_15 = arith.constant 0 : index
    %12 = vector.load %arg3[%c0_13, %c0_14, %c0_15] : memref<2x8x256xf32, #tpu.memory_space<vmem>>, vector<2x8x256xf32>
    %cst_16 = arith.constant dense<0.000000e+00> : vector<2x256xf32>
    %13 = vector.multi_reduction <add>, %12, %cst_16 [1] : vector<2x8x256xf32> to vector<2x256xf32>
    %cst_17 = arith.constant 8.000000e+00 : f32
    %14 = vector.broadcast %cst_17 : f32 to vector<2x256xf32>
    %15 = arith.divf %13, %14 : vector<2x256xf32>
    %16 = tpu.concatenate %3, %11 in 0 : vector<2x128xf32>, vector<2x128xf32> -> vector<4x128xf32>
    %c0_18 = arith.constant 0 : index
    %c0_19 = arith.constant 0 : index
    %17 = vector.load %arg4[%c0_18, %c0_19] : memref<128x256xbf16, #tpu.memory_space<vmem>>, vector<128x256xbf16>
    %18 = arith.extf %17 : vector<128x256xbf16> to vector<128x256xf32>
    %cst_20 = arith.constant dense<0.000000e+00> : vector<4x256xf32>
    %19 = tpu.matmul %16, %18, %cst_20 {dimension_numbers = #tpu.dot_dimension_numbers<[1], [0], [0], [1], [0, 0, 1, 1], [], []>} : vector<4x128xf32>, vector<128x256xf32>, vector<4x256xf32> -> vector<4x256xf32>
    %20 = vector.extract_strided_slice %19 {offsets = [0, 0], sizes = [2, 128], strides = [1, 1]} : vector<4x256xf32> to vector<2x128xf32>
    %c0_21 = arith.constant 0 : index
    %c256 = arith.constant 256 : index
    %21 = vector.load %arg7[%c0_21, %c256] : memref<8x384xf32, #tpu.memory_space<vmem>>, vector<1x128xf32>
    %22 = vector.broadcast %21 : vector<1x128xf32> to vector<2x128xf32>
    %23 = arith.addf %20, %22 : vector<2x128xf32>
    %c2 = arith.constant 2 : index
    %c256_22 = arith.constant 256 : index
    %24 = vector.load %arg7[%c2, %c256_22] : memref<8x384xf32, #tpu.memory_space<vmem>>, vector<1x128xf32>
    %c4 = arith.constant 4 : index
    %c256_23 = arith.constant 256 : index
    %25 = vector.load %arg7[%c4, %c256_23] : memref<8x384xf32, #tpu.memory_space<vmem>>, vector<1x128xf32>
    %cst_24 = arith.constant dense<0.000000e+00> : vector<2xf32>
    %26 = vector.multi_reduction <add>, %23, %cst_24 [1] : vector<2x128xf32> to vector<2xf32>
    %27 = vector.shape_cast %26 : vector<2xf32> to vector<2x1xf32>
    %cst_25 = arith.constant 1.280000e+02 : f32
    %28 = vector.broadcast %cst_25 : f32 to vector<2x1xf32>
    %29 = arith.divf %27, %28 : vector<2x1xf32>
    %30 = vector.broadcast %29 : vector<2x1xf32> to vector<2x128xf32>
    %31 = arith.subf %23, %30 : vector<2x128xf32>
    %32 = arith.mulf %31, %31 : vector<2x128xf32>
    %cst_26 = arith.constant dense<0.000000e+00> : vector<2xf32>
    %33 = vector.multi_reduction <add>, %32, %cst_26 [1] : vector<2x128xf32> to vector<2xf32>
    %34 = vector.shape_cast %33 : vector<2xf32> to vector<2x1xf32>
    %cst_27 = arith.constant 1.280000e+02 : f32
    %35 = vector.broadcast %cst_27 : f32 to vector<2x1xf32>
    %36 = arith.divf %34, %35 : vector<2x1xf32>
    %cst_28 = arith.constant 9.99999974E-6 : f32
    %37 = vector.broadcast %cst_28 : f32 to vector<2x1xf32>
    %38 = arith.addf %36, %37 : vector<2x1xf32>
    %39 = math.rsqrt %38 : vector<2x1xf32>
    %40 = vector.broadcast %39 : vector<2x1xf32> to vector<2x128xf32>
    %41 = arith.mulf %31, %40 : vector<2x128xf32>
    %42 = vector.broadcast %24 : vector<1x128xf32> to vector<2x128xf32>
    %43 = arith.mulf %41, %42 : vector<2x128xf32>
    %44 = vector.broadcast %25 : vector<1x128xf32> to vector<2x128xf32>
    %45 = arith.addf %43, %44 : vector<2x128xf32>
    %46 = vector.extract_strided_slice %19 {offsets = [2, 128], sizes = [2, 128], strides = [1, 1]} : vector<4x256xf32> to vector<2x128xf32>
    %c1 = arith.constant 1 : index
    %c256_29 = arith.constant 256 : index
    %47 = vector.load %arg7[%c1, %c256_29] : memref<8x384xf32, #tpu.memory_space<vmem>>, vector<1x128xf32>
    %48 = vector.broadcast %47 : vector<1x128xf32> to vector<2x128xf32>
    %49 = arith.addf %46, %48 : vector<2x128xf32>
    %c3 = arith.constant 3 : index
    %c256_30 = arith.constant 256 : index
    %50 = vector.load %arg7[%c3, %c256_30] : memref<8x384xf32, #tpu.memory_space<vmem>>, vector<1x128xf32>
    %c5 = arith.constant 5 : index
    %c256_31 = arith.constant 256 : index
    %51 = vector.load %arg7[%c5, %c256_31] : memref<8x384xf32, #tpu.memory_space<vmem>>, vector<1x128xf32>
    %cst_32 = arith.constant dense<0.000000e+00> : vector<2xf32>
    %52 = vector.multi_reduction <add>, %49, %cst_32 [1] : vector<2x128xf32> to vector<2xf32>
    %53 = vector.shape_cast %52 : vector<2xf32> to vector<2x1xf32>
    %cst_33 = arith.constant 1.280000e+02 : f32
    %54 = vector.broadcast %cst_33 : f32 to vector<2x1xf32>
    %55 = arith.divf %53, %54 : vector<2x1xf32>
    %56 = vector.broadcast %55 : vector<2x1xf32> to vector<2x128xf32>
    %57 = arith.subf %49, %56 : vector<2x128xf32>
    %58 = arith.mulf %57, %57 : vector<2x128xf32>
    %cst_34 = arith.constant dense<0.000000e+00> : vector<2xf32>
    %59 = vector.multi_reduction <add>, %58, %cst_34 [1] : vector<2x128xf32> to vector<2xf32>
    %60 = vector.shape_cast %59 : vector<2xf32> to vector<2x1xf32>
    %cst_35 = arith.constant 1.280000e+02 : f32
    %61 = vector.broadcast %cst_35 : f32 to vector<2x1xf32>
    %62 = arith.divf %60, %61 : vector<2x1xf32>
    %cst_36 = arith.constant 9.99999974E-6 : f32
    %63 = vector.broadcast %cst_36 : f32 to vector<2x1xf32>
    %64 = arith.addf %62, %63 : vector<2x1xf32>
    %65 = math.rsqrt %64 : vector<2x1xf32>
    %66 = vector.broadcast %65 : vector<2x1xf32> to vector<2x128xf32>
    %67 = arith.mulf %57, %66 : vector<2x128xf32>
    %68 = vector.broadcast %50 : vector<1x128xf32> to vector<2x128xf32>
    %69 = arith.mulf %67, %68 : vector<2x128xf32>
    %70 = vector.broadcast %51 : vector<1x128xf32> to vector<2x128xf32>
    %71 = arith.addf %69, %70 : vector<2x128xf32>
    %72 = tpu.concatenate %7, %15 in 0 : vector<2x256xf32>, vector<2x256xf32> -> vector<4x256xf32>
    %c0_37 = arith.constant 0 : index
    %c0_38 = arith.constant 0 : index
    %73 = vector.load %arg5[%c0_37, %c0_38] : memref<256x512xbf16, #tpu.memory_space<vmem>>, vector<256x512xbf16>
    %74 = arith.extf %73 : vector<256x512xbf16> to vector<256x512xf32>
    %cst_39 = arith.constant dense<0.000000e+00> : vector<4x512xf32>
    %75 = tpu.matmul %72, %74, %cst_39 {dimension_numbers = #tpu.dot_dimension_numbers<[1], [0], [0], [1], [0, 0, 1, 1], [], []>} : vector<4x256xf32>, vector<256x512xf32>, vector<4x512xf32> -> vector<4x512xf32>
    %76 = vector.extract_strided_slice %75 {offsets = [0, 0], sizes = [2, 256], strides = [1, 1]} : vector<4x512xf32> to vector<2x256xf32>
    %c0_40 = arith.constant 0 : index
    %c0_41 = arith.constant 0 : index
    %77 = vector.load %arg7[%c0_40, %c0_41] : memref<8x384xf32, #tpu.memory_space<vmem>>, vector<1x256xf32>
    %78 = vector.broadcast %77 : vector<1x256xf32> to vector<2x256xf32>
    %79 = arith.addf %76, %78 : vector<2x256xf32>
    %c2_42 = arith.constant 2 : index
    %c0_43 = arith.constant 0 : index
    %80 = vector.load %arg7[%c2_42, %c0_43] : memref<8x384xf32, #tpu.memory_space<vmem>>, vector<1x256xf32>
    %c4_44 = arith.constant 4 : index
    %c0_45 = arith.constant 0 : index
    %81 = vector.load %arg7[%c4_44, %c0_45] : memref<8x384xf32, #tpu.memory_space<vmem>>, vector<1x256xf32>
    %cst_46 = arith.constant dense<0.000000e+00> : vector<2xf32>
    %82 = vector.multi_reduction <add>, %79, %cst_46 [1] : vector<2x256xf32> to vector<2xf32>
    %83 = vector.shape_cast %82 : vector<2xf32> to vector<2x1xf32>
    %cst_47 = arith.constant 2.560000e+02 : f32
    %84 = vector.broadcast %cst_47 : f32 to vector<2x1xf32>
    %85 = arith.divf %83, %84 : vector<2x1xf32>
    %86 = vector.broadcast %85 : vector<2x1xf32> to vector<2x256xf32>
    %87 = arith.subf %79, %86 : vector<2x256xf32>
    %88 = arith.mulf %87, %87 : vector<2x256xf32>
    %cst_48 = arith.constant dense<0.000000e+00> : vector<2xf32>
    %89 = vector.multi_reduction <add>, %88, %cst_48 [1] : vector<2x256xf32> to vector<2xf32>
    %90 = vector.shape_cast %89 : vector<2xf32> to vector<2x1xf32>
    %cst_49 = arith.constant 2.560000e+02 : f32
    %91 = vector.broadcast %cst_49 : f32 to vector<2x1xf32>
    %92 = arith.divf %90, %91 : vector<2x1xf32>
    %cst_50 = arith.constant 9.99999974E-6 : f32
    %93 = vector.broadcast %cst_50 : f32 to vector<2x1xf32>
    %94 = arith.addf %92, %93 : vector<2x1xf32>
    %95 = math.rsqrt %94 : vector<2x1xf32>
    %96 = vector.broadcast %95 : vector<2x1xf32> to vector<2x256xf32>
    %97 = arith.mulf %87, %96 : vector<2x256xf32>
    %98 = vector.broadcast %80 : vector<1x256xf32> to vector<2x256xf32>
    %99 = arith.mulf %97, %98 : vector<2x256xf32>
    %100 = vector.broadcast %81 : vector<1x256xf32> to vector<2x256xf32>
    %101 = arith.addf %99, %100 : vector<2x256xf32>
    %102 = vector.extract_strided_slice %75 {offsets = [2, 256], sizes = [2, 256], strides = [1, 1]} : vector<4x512xf32> to vector<2x256xf32>
    %c1_51 = arith.constant 1 : index
    %c0_52 = arith.constant 0 : index
    %103 = vector.load %arg7[%c1_51, %c0_52] : memref<8x384xf32, #tpu.memory_space<vmem>>, vector<1x256xf32>
    %104 = vector.broadcast %103 : vector<1x256xf32> to vector<2x256xf32>
    %105 = arith.addf %102, %104 : vector<2x256xf32>
    %c3_53 = arith.constant 3 : index
    %c0_54 = arith.constant 0 : index
    %106 = vector.load %arg7[%c3_53, %c0_54] : memref<8x384xf32, #tpu.memory_space<vmem>>, vector<1x256xf32>
    %c5_55 = arith.constant 5 : index
    %c0_56 = arith.constant 0 : index
    %107 = vector.load %arg7[%c5_55, %c0_56] : memref<8x384xf32, #tpu.memory_space<vmem>>, vector<1x256xf32>
    %cst_57 = arith.constant dense<0.000000e+00> : vector<2xf32>
    %108 = vector.multi_reduction <add>, %105, %cst_57 [1] : vector<2x256xf32> to vector<2xf32>
    %109 = vector.shape_cast %108 : vector<2xf32> to vector<2x1xf32>
    %cst_58 = arith.constant 2.560000e+02 : f32
    %110 = vector.broadcast %cst_58 : f32 to vector<2x1xf32>
    %111 = arith.divf %109, %110 : vector<2x1xf32>
    %112 = vector.broadcast %111 : vector<2x1xf32> to vector<2x256xf32>
    %113 = arith.subf %105, %112 : vector<2x256xf32>
    %114 = arith.mulf %113, %113 : vector<2x256xf32>
    %cst_59 = arith.constant dense<0.000000e+00> : vector<2xf32>
    %115 = vector.multi_reduction <add>, %114, %cst_59 [1] : vector<2x256xf32> to vector<2xf32>
    %116 = vector.shape_cast %115 : vector<2xf32> to vector<2x1xf32>
    %cst_60 = arith.constant 2.560000e+02 : f32
    %117 = vector.broadcast %cst_60 : f32 to vector<2x1xf32>
    %118 = arith.divf %116, %117 : vector<2x1xf32>
    %cst_61 = arith.constant 9.99999974E-6 : f32
    %119 = vector.broadcast %cst_61 : f32 to vector<2x1xf32>
    %120 = arith.addf %118, %119 : vector<2x1xf32>
    %121 = math.rsqrt %120 : vector<2x1xf32>
    %122 = vector.broadcast %121 : vector<2x1xf32> to vector<2x256xf32>
    %123 = arith.mulf %113, %122 : vector<2x256xf32>
    %124 = vector.broadcast %106 : vector<1x256xf32> to vector<2x256xf32>
    %125 = arith.mulf %123, %124 : vector<2x256xf32>
    %126 = vector.broadcast %107 : vector<1x256xf32> to vector<2x256xf32>
    %127 = arith.addf %125, %126 : vector<2x256xf32>
    %128 = tpu.concatenate %101, %127 in 0 : vector<2x256xf32>, vector<2x256xf32> -> vector<4x256xf32>
    %c0_62 = arith.constant 0 : index
    %c0_63 = arith.constant 0 : index
    %129 = vector.load %arg6[%c0_62, %c0_63] : memref<256x128xbf16, #tpu.memory_space<vmem>>, vector<256x128xbf16>
    %130 = arith.extf %129 : vector<256x128xbf16> to vector<256x128xf32>
    %cst_64 = arith.constant dense<0.000000e+00> : vector<4x128xf32>
    %131 = tpu.matmul %128, %130, %cst_64 {dimension_numbers = #tpu.dot_dimension_numbers<[1], [0], [0], [1], [0, 0, 1, 1], [], []>} : vector<4x256xf32>, vector<256x128xf32>, vector<4x128xf32> -> vector<4x128xf32>
    %c6 = arith.constant 6 : index
    %c256_65 = arith.constant 256 : index
    %132 = vector.load %arg7[%c6, %c256_65] : memref<8x384xf32, #tpu.memory_space<vmem>>, vector<1x128xf32>
    %133 = vector.broadcast %132 : vector<1x128xf32> to vector<4x128xf32>
    %134 = arith.addf %131, %133 : vector<4x128xf32>
    %135 = tpu.concatenate %45, %71 in 0 : vector<2x128xf32>, vector<2x128xf32> -> vector<4x128xf32>
    %136 = arith.subf %135, %134 : vector<4x128xf32>
    %137 = arith.mulf %136, %136 : vector<4x128xf32>
    %cst_66 = arith.constant dense<0.000000e+00> : vector<4xf32>
    %138 = vector.multi_reduction <add>, %137, %cst_66 [1] : vector<4x128xf32> to vector<4xf32>
    %139 = vector.shape_cast %138 : vector<4xf32> to vector<4x1xf32>
    %140 = vector.extract_strided_slice %139 {offsets = [0, 0], sizes = [2, 1], strides = [1, 1]} : vector<4x1xf32> to vector<2x1xf32>
    %141 = vector.shape_cast %140 : vector<2x1xf32> to vector<1x2x1xf32>
    %cst_67 = arith.constant dense<0.000000e+00> : vector<1xf32>
    %142 = vector.multi_reduction <add>, %141, %cst_67 [1, 2] : vector<1x2x1xf32> to vector<1xf32>
    %143 = vector.shape_cast %142 : vector<1xf32> to vector<1x1x1xf32>
    %144 = vector.extract %143[0, 0, 0] : f32 from vector<1x1x1xf32>
    %cst_68 = arith.constant 3.906250e-03 : f32
    %145 = arith.mulf %144, %cst_68 : f32
    %146 = vector.extract_strided_slice %139 {offsets = [2, 0], sizes = [2, 1], strides = [1, 1]} : vector<4x1xf32> to vector<2x1xf32>
    %147 = vector.shape_cast %146 : vector<2x1xf32> to vector<1x2x1xf32>
    %cst_69 = arith.constant dense<0.000000e+00> : vector<1xf32>
    %148 = vector.multi_reduction <add>, %147, %cst_69 [1, 2] : vector<1x2x1xf32> to vector<1xf32>
    %149 = vector.shape_cast %148 : vector<1xf32> to vector<1x1x1xf32>
    %150 = vector.extract %149[0, 0, 0] : f32 from vector<1x1x1xf32>
    %cst_70 = arith.constant 3.906250e-03 : f32
    %151 = arith.mulf %150, %cst_70 : f32
    %152 = tpu.iota {dimensions = array<i32: 1>} : vector<1x128xi32>
    %c0_i32 = arith.constant 0 : i32
    %153 = vector.broadcast %c0_i32 : i32 to vector<1x128xi32>
    %154 = arith.cmpi eq, %152, %153 : vector<1x128xi32>
    %c1_i32 = arith.constant 1 : i32
    %155 = vector.broadcast %c1_i32 : i32 to vector<1x128xi32>
    %156 = arith.cmpi eq, %152, %155 : vector<1x128xi32>
    %cst_71 = arith.constant 0.000000e+00 : f32
    %157 = vector.broadcast %151 : f32 to vector<1x128xf32>
    %158 = vector.broadcast %cst_71 : f32 to vector<1x128xf32>
    %159 = arith.select %156, %157, %158 : vector<1x128xi1>, vector<1x128xf32>
    %160 = vector.broadcast %145 : f32 to vector<1x128xf32>
    %161 = arith.select %154, %160, %159 : vector<1x128xi1>, vector<1x128xf32>
    %c0_72 = arith.constant 0 : index
    %c0_73 = arith.constant 0 : index
    %162 = vector.load %arg8[%c0_72, %c0_73] : memref<1x128xf32, #tpu.memory_space<vmem>>, vector<1x128xf32>
    tpu.vector_store %arg8[%c0_72, %c0_73], %161 {strides = array<i32>} : memref<1x128xf32, #tpu.memory_space<vmem>>, vector<1x128xf32>,
    return
  }
}

</mosaic_0001>

<llo_original>
// kernel: alignment_forward.1
$region0: #{alignment_forward.1}
  #allocation0 [shape = 'u32[]', space=smem, size = 0x4, offset = 0x4, fixed_abs, tag = 'smem constant byte address 0x4 - core index']
  #allocation1 [shape = 'u32[144,128]{1,0:T(1,128)}', space=vmem, size = 0x12000, scoped, tag = 'internal scratch']
  %s0 = inlined_call_operand.vmem [shape: f32[2,8,128], index: 0, kind: input, shape index: {}]
  %s1 = inlined_call_operand.vmem [shape: f32[2,8,256], index: 1, kind: input, shape index: {}]
  %s2 = inlined_call_operand.hbm [shape: f32[2,8,128], index: 2, kind: input, shape index: {}]
  %s3 = inlined_call_operand.vmem [shape: f32[2,8,256], index: 3, kind: input, shape index: {}]
  %s4 = inlined_call_operand.hbm [shape: bf16[128,256], index: 4, kind: input, shape index: {}]
  %s5 = inlined_call_operand.hbm [shape: bf16[256,512], index: 5, kind: input, shape index: {}]
  %s6 = inlined_call_operand.hbm [shape: bf16[256,128], index: 6, kind: input, shape index: {}]
  %s7 = inlined_call_operand.vmem [shape: f32[8,384], index: 7, kind: input, shape index: {}]
  %s8 = inlined_call_operand.vmem [shape: f32[1,128], index: 8, kind: output, shape index: {}]
  %s9 = sld [smem:[#allocation0]]
  $region58: #{alignment_forward.1} parent=0
    _
  %s11 = ssub.s32 1, %s9
  %s12 = scalar_select 0, %s11, %s9
  $region1: #{alignment_forward.1} parent=0
    #allocation2 [shape = 'u8[8192]{0}', space=vmem, size = 0x2000, scoped, tag = 'input window, operand 2, single buffered']
    #allocation3 [shape = 's32[1]{0}', space=sflag, size = 0x4, scoped, tag = 'scoped memory for alignment_forward.1']
    #allocation4 [shape = 'u8[65536]{0}', space=vmem, size = 0x10000, scoped, tag = 'input window, operand 4, single buffered']
    #allocation5 [shape = 's32[1]{0}', space=sflag, size = 0x4, scoped, tag = 'scoped memory for alignment_forward.1']
    #allocation6 [shape = 'u8[262144]{0}', space=vmem, size = 0x40000, scoped, tag = 'input window, operand 5, single buffered']
    #allocation7 [shape = 'u8[65536]{0}', space=vmem, size = 0x10000, scoped, tag = 'input window, operand 6, single buffered']
    #allocation8 [shape = 's32[1]{0}', space=sflag, size = 0x4, scoped, tag = 'scoped memory for alignment_forward.1']
    %13 = vsyncpa [#allocation3], 0
    %14 = vsyncpa [#allocation5], 0
    %15 = vsyncpa [#allocation8], 0
    // Predicated region
    $region2: #{alignment_forward.1} parent=1 // pred_check
      _
    $region3: #{alignment_forward.1} parent=1 // pred_check_branch
      %17 = sbr.rel (0) target = $region5
    $region4: #{alignment_forward.1} parent=1 // pred_region
      _
    $region5: #{alignment_forward.1} parent=1 // pred_fallthru
      _
    // Predicated region
    $region6: #{alignment_forward.1} parent=1 // pred_check
      _
    $region7: #{alignment_forward.1} parent=1 // pred_check_branch
      %19 = sbr.rel (0) target = $region9
    $region8: #{alignment_forward.1} parent=1 // pred_region
      _
    $region9: #{alignment_forward.1} parent=1 // pred_fallthru
      _
    // Predicated region
    $region10: #{alignment_forward.1} parent=1 // pred_check
      _
    $region11: #{alignment_forward.1} parent=1 // pred_check_branch
      %21 = sbr.rel (0) target = $region13
    $region12: #{alignment_forward.1} parent=1 // pred_region
      %s23 = ssub.s32 256, 256
      %24 = vsyncadd [#allocation3], %s23
      %s25 = sshll.u32 [#allocation2], 4
      %s26 = int_to_ptr.vmem [resolvable:$true] %s25
      %31 = dma.hbm_to_vmem [thread:$0]  %s2, 256, %s26, [#allocation3], 128, 128, 8
    $region13: #{alignment_forward.1} parent=1 // pred_fallthru
      _
    // Predicated region
    $region14: #{alignment_forward.1} parent=1 // pred_check
      _
    $region15: #{alignment_forward.1} parent=1 // pred_check_branch
      %33 = sbr.rel (0) target = $region17
    $region16: #{alignment_forward.1} parent=1 // pred_region
      _
    $region17: #{alignment_forward.1} parent=1 // pred_fallthru
      _
    // Predicated region
    $region18: #{alignment_forward.1} parent=1 // pred_check
      _
    $region19: #{alignment_forward.1} parent=1 // pred_check_branch
      %35 = sbr.rel (0) target = $region21
    $region20: #{alignment_forward.1} parent=1 // pred_region
      %s37 = ssub.s32 2048, 2048
      %38 = vsyncadd [#allocation5], %s37
      %s39 = sshll.u32 [#allocation4], 4
      %s40 = int_to_ptr.vmem [resolvable:$true] %s39
      %45 = dma.hbm_to_vmem [thread:$0]  %s4, 2048, %s40, [#allocation5], 128, 128, 8
    $region21: #{alignment_forward.1} parent=1 // pred_fallthru
      _
    // Predicated region
    $region22: #{alignment_forward.1} parent=1 // pred_check
      _
    $region23: #{alignment_forward.1} parent=1 // pred_check_branch
      %47 = sbr.rel (0) target = $region25
    $region24: #{alignment_forward.1} parent=1 // pred_region
      %s49 = ssub.s32 8192, 8192
      %50 = vsyncadd [#allocation5], %s49
      %s51 = sshll.u32 [#allocation6], 4
      %s52 = int_to_ptr.vmem [resolvable:$true] %s51
      %57 = dma.hbm_to_vmem [thread:$0]  %s5, 8192, %s52, [#allocation5], 256, 256, 16
    $region25: #{alignment_forward.1} parent=1 // pred_fallthru
      _
    // Predicated region
    $region26: #{alignment_forward.1} parent=1 // pred_check
      _
    $region27: #{alignment_forward.1} parent=1 // pred_check_branch
      %59 = sbr.rel (0) target = $region29
    $region28: #{alignment_forward.1} parent=1 // pred_region
      %s61 = ssub.s32 2048, 2048
      %62 = vsyncadd [#allocation8], %s61
      %s63 = sshll.u32 [#allocation7], 4
      %s64 = int_to_ptr.vmem [resolvable:$true] %s63
      %69 = dma.hbm_to_vmem [thread:$0]  %s6, 2048, %s64, [#allocation8], 64, 64, 4
    $region29: #{alignment_forward.1} parent=1 // pred_fallthru
      _
    // Predicated region
    $region30: #{alignment_forward.1} parent=1 // pred_check
      _
    $region31: #{alignment_forward.1} parent=1 // pred_check_branch
      %71 = sbr.rel (0) target = $region33
    $region32: #{alignment_forward.1} parent=1 // pred_region
      _
    $region33: #{alignment_forward.1} parent=1 // pred_fallthru
      _
    // Predicated region
    $region34: #{alignment_forward.1} parent=1 // pred_check
      _
    $region35: #{alignment_forward.1} parent=1 // pred_check_branch
      %73 = sbr.rel (0) target = $region37
    $region36: #{alignment_forward.1} parent=1 // pred_region
      %74 = dma.done [#allocation3], 256
    $region37: #{alignment_forward.1} parent=1 // pred_fallthru
      _
    // Predicated region
    $region38: #{alignment_forward.1} parent=1 // pred_check
      _
    $region39: #{alignment_forward.1} parent=1 // pred_check_branch
      %76 = sbr.rel (0) target = $region41
    $region40: #{alignment_forward.1} parent=1 // pred_region
      %77 = dma.done [#allocation5], 2048
    $region41: #{alignment_forward.1} parent=1 // pred_fallthru
      _
    // Predicated region
    $region42: #{alignment_forward.1} parent=1 // pred_check
      _
    $region43: #{alignment_forward.1} parent=1 // pred_check_branch
      %79 = sbr.rel (0) target = $region45
    $region44: #{alignment_forward.1} parent=1 // pred_region
      %80 = dma.done [#allocation5], 8192
    $region45: #{alignment_forward.1} parent=1 // pred_fallthru
      _
    // Predicated region
    $region46: #{alignment_forward.1} parent=1 // pred_check
      _
    $region47: #{alignment_forward.1} parent=1 // pred_check_branch
      %82 = sbr.rel (0) target = $region49
    $region48: #{alignment_forward.1} parent=1 // pred_region
      %83 = dma.done [#allocation8], 2048
    $region49: #{alignment_forward.1} parent=1 // pred_fallthru
      _
    %v84 = vld [vmem:[%s0] sm:$0xff]
    %v85 = vld [vmem:[%s0 + $0x8] sm:$0xff]
    %v86 = vrot.slane %v84, 4
    %v87 = vadd.f32 %v84, %v86
    %v88 = vrot.slane %v87, 2
    %v89 = vadd.f32 %v87, %v88
    %v90 = vrot.slane %v89, 1
    %v91 = vadd.f32 %v89, %v90
    %v92 = vrot.slane %v85, 4
    %v93 = vadd.f32 %v85, %v92
    %v94 = vrot.slane %v93, 2
    %v95 = vadd.f32 %v93, %v94
    %v96 = vrot.slane %v95, 1
    %v97 = vadd.f32 %v95, %v96
    %v98 = vrcp.pop 8.0
    %v99 = vmul.f32 %v91, %v98
    %v100 = vmul.f32 %v97, %v98
    %v101 = vld [vmem:[%s1] sm:$0xff]
    %v102 = vld [vmem:[%s1 + $0x8] sm:$0xff]
    %v103 = vld [vmem:[%s1 + $0x10] sm:$0xff]
    %v104 = vld [vmem:[%s1 + $0x18] sm:$0xff]
    %v105 = vrot.slane %v101, 4
    %v106 = vadd.f32 %v101, %v105
    %v107 = vrot.slane %v106, 2
    %v108 = vadd.f32 %v106, %v107
    %v109 = vrot.slane %v108, 1
    %v110 = vadd.f32 %v108, %v109
    %v111 = vrot.slane %v102, 4
    %v112 = vadd.f32 %v102, %v111
    %v113 = vrot.slane %v112, 2
    %v114 = vadd.f32 %v112, %v113
    %v115 = vrot.slane %v114, 1
    %v116 = vadd.f32 %v114, %v115
    %v117 = vrot.slane %v103, 4
    %v118 = vadd.f32 %v103, %v117
    %v119 = vrot.slane %v118, 2
    %v120 = vadd.f32 %v118, %v119
    %v121 = vrot.slane %v120, 1
    %v122 = vadd.f32 %v120, %v121
    %v123 = vrot.slane %v104, 4
    %v124 = vadd.f32 %v104, %v123
    %v125 = vrot.slane %v124, 2
    %v126 = vadd.f32 %v124, %v125
    %v127 = vrot.slane %v126, 1
    %v128 = vadd.f32 %v126, %v127
    %v129 = vmul.f32 %v110, %v98
    %v130 = vmul.f32 %v116, %v98
    %v131 = vmul.f32 %v122, %v98
    %v132 = vmul.f32 %v128, %v98
    %v133 = vld [vmem:[#allocation2] sm:$0xff]
    %v134 = vld [vmem:[#allocation2 + $0x8] sm:$0xff]
    %v135 = vrot.slane %v133, 4
    %v136 = vadd.f32 %v133, %v135
    %v137 = vrot.slane %v136, 2
    %v138 = vadd.f32 %v136, %v137
    %v139 = vrot.slane %v138, 1
    %v140 = vadd.f32 %v138, %v139
    %v141 = vrot.slane %v134, 4
    %v142 = vadd.f32 %v134, %v141
    %v143 = vrot.slane %v142, 2
    %v144 = vadd.f32 %v142, %v143
    %v145 = vrot.slane %v144, 1
    %v146 = vadd.f32 %v144, %v145
    %v147 = vmul.f32 %v140, %v98
    %v148 = vmul.f32 %v146, %v98
    %v149 = vld [vmem:[%s3] sm:$0xff]
    %v150 = vld [vmem:[%s3 + $0x8] sm:$0xff]
    %v151 = vld [vmem:[%s3 + $0x10] sm:$0xff]
    %v152 = vld [vmem:[%s3 + $0x18] sm:$0xff]
    %v153 = vrot.slane %v149, 4
    %v154 = vadd.f32 %v149, %v153
    %v155 = vrot.slane %v154, 2
    %v156 = vadd.f32 %v154, %v155
    %v157 = vrot.slane %v156, 1
    %v158 = vadd.f32 %v156, %v157
    %v159 = vrot.slane %v150, 4
    %v160 = vadd.f32 %v150, %v159
    %v161 = vrot.slane %v160, 2
    %v162 = vadd.f32 %v160, %v161
    %v163 = vrot.slane %v162, 1
    %v164 = vadd.f32 %v162, %v163
    %v165 = vrot.slane %v151, 4
    %v166 = vadd.f32 %v151, %v165
    %v167 = vrot.slane %v166, 2
    %v168 = vadd.f32 %v166, %v167
    %v169 = vrot.slane %v168, 1
    %v170 = vadd.f32 %v168, %v169
    %v171 = vrot.slane %v152, 4
    %v172 = vadd.f32 %v152, %v171
    %v173 = vrot.slane %v172, 2
    %v174 = vadd.f32 %v172, %v173
    %v175 = vrot.slane %v174, 1
    %v176 = vadd.f32 %v174, %v175
    %v177 = vmul.f32 %v158, %v98
    %v178 = vmul.f32 %v164, %v98
    %v179 = vmul.f32 %v170, %v98
    %v180 = vmul.f32 %v176, %v98
    %vm183 = vcmask 1041409
    %v184 = vsel %vm183, %v100, %v99
    %vm188 = vcmask 1043459
    %v189 = vsel %vm188, %v148, %v147
    %vm191 = vcmask 1041408
    %v192 = vsel %vm191, %v184, %v189
    %v193 = vld [vmem:[#allocation4] sm:$0xff]
    %v194 = vld [vmem:[#allocation4 + $0x8] sm:$0xff]
    %v195 = vld [vmem:[#allocation4 + $0x10] sm:$0xff]
    %v196 = vld [vmem:[#allocation4 + $0x18] sm:$0xff]
    %v197 = vld [vmem:[#allocation4 + $0x20] sm:$0xff]
    %v198 = vld [vmem:[#allocation4 + $0x28] sm:$0xff]
    %v199 = vld [vmem:[#allocation4 + $0x30] sm:$0xff]
    %v200 = vld [vmem:[#allocation4 + $0x38] sm:$0xff]
    %v201 = vld [vmem:[#allocation4 + $0x40] sm:$0xff]
    %v202 = vld [vmem:[#allocation4 + $0x48] sm:$0xff]
    %v203 = vld [vmem:[#allocation4 + $0x50] sm:$0xff]
    %v204 = vld [vmem:[#allocation4 + $0x58] sm:$0xff]
    %v205 = vld [vmem:[#allocation4 + $0x60] sm:$0xff]
    %v206 = vld [vmem:[#allocation4 + $0x68] sm:$0xff]
    %v207 = vld [vmem:[#allocation4 + $0x70] sm:$0xff]
    %v208 = vld [vmem:[#allocation4 + $0x78] sm:$0xff]
    %v209 = vunpack.c.l.bf16 %v193
    %v210 = vunpack.c.h.bf16 %v193
    %v211 = vunpack.c.l.bf16 %v194
    %v212 = vunpack.c.h.bf16 %v194
    %v213 = vunpack.c.l.bf16 %v195
    %v214 = vunpack.c.h.bf16 %v195
    %v215 = vunpack.c.l.bf16 %v196
    %v216 = vunpack.c.h.bf16 %v196
    %v217 = vunpack.c.l.bf16 %v197
    %v218 = vunpack.c.h.bf16 %v197
    %v219 = vunpack.c.l.bf16 %v198
    %v220 = vunpack.c.h.bf16 %v198
    %v221 = vunpack.c.l.bf16 %v199
    %v222 = vunpack.c.h.bf16 %v199
    %v223 = vunpack.c.l.bf16 %v200
    %v224 = vunpack.c.h.bf16 %v200
    %v225 = vunpack.c.l.bf16 %v201
    %v226 = vunpack.c.h.bf16 %v201
    %v227 = vunpack.c.l.bf16 %v202
    %v228 = vunpack.c.h.bf16 %v202
    %v229 = vunpack.c.l.bf16 %v203
    %v230 = vunpack.c.h.bf16 %v203
    %v231 = vunpack.c.l.bf16 %v204
    %v232 = vunpack.c.h.bf16 %v204
    %v233 = vunpack.c.l.bf16 %v205
    %v234 = vunpack.c.h.bf16 %v205
    %v235 = vunpack.c.l.bf16 %v206
    %v236 = vunpack.c.h.bf16 %v206
    %v237 = vunpack.c.l.bf16 %v207
    %v238 = vunpack.c.h.bf16 %v207
    %v239 = vunpack.c.l.bf16 %v208
    %v240 = vunpack.c.h.bf16 %v208
    %241 = vmatprep.subr.mxu0 %v210
    %242 = vmatpush1.msra.mxu0 %v209
    %243 = vmatprep.subr.mxu0 %v212
    %244 = vmatpush1.msra.mxu0 %v211
    %245 = vmatprep.subr.mxu0 %v214
    %246 = vmatpush1.msra.mxu0 %v213
    %247 = vmatprep.subr.mxu0 %v216
    %248 = vmatpush1.msra.mxu0 %v215
    %249 = vmatprep.subr.mxu0 %v218
    %250 = vmatpush1.msra.mxu0 %v217
    %251 = vmatprep.subr.mxu0 %v220
    %252 = vmatpush1.msra.mxu0 %v219
    %253 = vmatprep.subr.mxu0 %v222
    %254 = vmatpush1.msra.mxu0 %v221
    %255 = vmatprep.subr.mxu0 %v224
    %256 = vmatpush1.msra.mxu0 %v223
    %257 = vmatprep.subr.mxu0 %v226
    %258 = vmatpush1.msra.mxu0 %v225
    %259 = vmatprep.subr.mxu0 %v228
    %260 = vmatpush1.msra.mxu0 %v227
    %261 = vmatprep.subr.mxu0 %v230
    %262 = vmatpush1.msra.mxu0 %v229
    %263 = vmatprep.subr.mxu0 %v232
    %264 = vmatpush1.msra.mxu0 %v231
    %265 = vmatprep.subr.mxu0 %v234
    %266 = vmatpush1.msra.mxu0 %v233
    %267 = vmatprep.subr.mxu0 %v236
    %268 = vmatpush1.msra.mxu0 %v235
    %269 = vmatprep.subr.mxu0 %v238
    %270 = vmatpush1.msra.mxu0 %v237
    %271 = vmatprep.subr.mxu0 %v240
    %272 = vmatpush1.msra.mxu0 %v239
    %273 = vmatprep.subr.mxu0 0.0
    %274 = vmatpush1.msra.mxu0 0.0
    %275 = vmatprep.subr.mxu0 0.0
    %276 = vmatpush1.msra.mxu0 0.0
    %277 = vmatprep.subr.mxu0 0.0
    %278 = vmatpush1.msra.mxu0 0.0
    %279 = vmatprep.subr.mxu0 0.0
    %280 = vmatpush1.msra.mxu0 0.0
    %281 = vmatprep.subr.mxu0 0.0
    %282 = vmatpush1.msra.mxu0 0.0
    %283 = vmatprep.subr.mxu0 0.0
    %284 = vmatpush1.msra.mxu0 0.0
    %285 = vmatprep.subr.mxu0 0.0
    %286 = vmatpush1.msra.mxu0 0.0
    %287 = vmatprep.subr.mxu0 0.0
    %288 = vmatpush1.msra.mxu0 0.0
    %289 = vmatprep.subr.mxu0 0.0
    %290 = vmatpush1.msra.mxu0 0.0
    %291 = vmatprep.subr.mxu0 0.0
    %292 = vmatpush1.msra.mxu0 0.0
    %293 = vmatprep.subr.mxu0 0.0
    %294 = vmatpush1.msra.mxu0 0.0
    %295 = vmatprep.subr.mxu0 0.0
    %296 = vmatpush1.msra.mxu0 0.0
    %297 = vmatprep.subr.mxu0 0.0
    %298 = vmatpush1.msra.mxu0 0.0
    %299 = vmatprep.subr.mxu0 0.0
    %300 = vmatpush1.msra.mxu0 0.0
    %301 = vmatprep.subr.mxu0 0.0
    %302 = vmatpush1.msra.mxu0 0.0
    %303 = vmatprep.subr.mxu0 0.0
    %304 = vmatpush1.msra.mxu0 0.0
    %305 = vmatprep.mubr.f32.mxu0 0.0
    %306 = vmatmul.mubr.f32.gmra.mrb[0].mxu0 %v192
    %v307 = vpop.f32.mrb[0].mxu0
    %v308 = vadd.f32 0.0, %v307
    %v309 = vpop.f32.mrb[0].mxu0
    %v310 = vadd.f32 0.0, %v309
    %311 = vdwg.mxu0
    %v312 = vld [vmem:[%s7 + $0x10] ss:$0 sm:$0xff]
    %v313 = vadd.f32 %v308, %v312
    %v314 = vld [vmem:[%s7 + $0x12] ss:$0 sm:$0xff]
    %v315 = vld [vmem:[%s7 + $0x14] ss:$0 sm:$0xff]
    %v316 = vsel %vm191, %v313, 0.0
    %317 = vadd.xlane.f32.xlu0 %v316
    %v318 = vpop.xlane.xlu0 %317
    %v319 = vrcp.pop 128.0
    %v320 = vmul.f32 %v318, %v319
    %v321 = vsub.f32 %v313, %v320
    %v322 = vmul.f32 %v321, %v321
    %v323 = vsel %vm191, %v322, 0.0
    %324 = vadd.xlane.f32.xlu0 %v323
    %v325 = vpop.xlane.xlu0 %324
    %v326 = vmul.f32 %v325, %v319
    %v327 = vadd.f32 %v326, 1e-05
    %v328 = vrsqrt.pop %v327
    %v329 = vmul.f32 %v321, %v328
    %v330 = vmul.f32 %v329, %v314
    %v331 = vadd.f32 %v330, %v315
    %v332 = vld [vmem:[%s7 + $0x11] ss:$0 sm:$0xff]
    %v333 = vadd.f32 %v310, %v332
    %v334 = vld [vmem:[%s7 + $0x13] ss:$0 sm:$0xff]
    %v335 = vld [vmem:[%s7 + $0x15] ss:$0 sm:$0xff]
    %vm336 = vcmask 1043458
    %v337 = vsel %vm336, %v333, 0.0
    %338 = vadd.xlane.f32.xlu0 %v337
    %v339 = vpop.xlane.xlu0 %338
    %v340 = vmul.f32 %v339, %v319
    %v341 = vsub.f32 %v333, %v340
    %v342 = vmul.f32 %v341, %v341
    %v343 = vsel %vm336, %v342, 0.0
    %344 = vadd.xlane.f32.xlu0 %v343
    %v345 = vpop.xlane.xlu0 %344
    %v346 = vmul.f32 %v345, %v319
    %v347 = vadd.f32 %v346, 1e-05
    %v348 = vrsqrt.pop %v347
    %v349 = vmul.f32 %v341, %v348
    %v350 = vmul.f32 %v349, %v334
    %v351 = vadd.f32 %v350, %v335
    %v356 = vsel %vm183, %v131, %v129
    %v357 = vsel %vm183, %v132, %v130
    %v364 = vsel %vm188, %v179, %v177
    %v365 = vsel %vm188, %v180, %v178
    %v368 = vsel %vm191, %v356, %v364
    %v369 = vsel %vm191, %v357, %v365
    %v370 = vld [vmem:[#allocation6] sm:$0xff]
    %v371 = vld [vmem:[#allocation6 + $0x8] sm:$0xff]
    %v372 = vld [vmem:[#allocation6 + $0x10] sm:$0xff]
    %v373 = vld [vmem:[#allocation6 + $0x18] sm:$0xff]
    %v374 = vld [vmem:[#allocation6 + $0x20] sm:$0xff]
    %v375 = vld [vmem:[#allocation6 + $0x28] sm:$0xff]
    %v376 = vld [vmem:[#allocation6 + $0x30] sm:$0xff]
    %v377 = vld [vmem:[#allocation6 + $0x38] sm:$0xff]
    %v378 = vld [vmem:[#allocation6 + $0x40] sm:$0xff]
    %v379 = vld [vmem:[#allocation6 + $0x48] sm:$0xff]
    %v380 = vld [vmem:[#allocation6 + $0x50] sm:$0xff]
    %v381 = vld [vmem:[#allocation6 + $0x58] sm:$0xff]
    %v382 = vld [vmem:[#allocation6 + $0x60] sm:$0xff]
    %v383 = vld [vmem:[#allocation6 + $0x68] sm:$0xff]
    %v384 = vld [vmem:[#allocation6 + $0x70] sm:$0xff]
    %v385 = vld [vmem:[#allocation6 + $0x78] sm:$0xff]
    %v386 = vld [vmem:[#allocation6 + $0x80] sm:$0xff]
    %v387 = vld [vmem:[#allocation6 + $0x88] sm:$0xff]
    %v388 = vld [vmem:[#allocation6 + $0x90] sm:$0xff]
    %v389 = vld [vmem:[#allocation6 + $0x98] sm:$0xff]
    %v390 = vld [vmem:[#allocation6 + $0xa0] sm:$0xff]
    %v391 = vld [vmem:[#allocation6 + $0xa8] sm:$0xff]
    %v392 = vld [vmem:[#allocation6 + $0xb0] sm:$0xff]
    %v393 = vld [vmem:[#allocation6 + $0xb8] sm:$0xff]
    %v394 = vld [vmem:[#allocation6 + $0xc0] sm:$0xff]
    %v395 = vld [vmem:[#allocation6 + $0xc8] sm:$0xff]
    %v396 = vld [vmem:[#allocation6 + $0xd0] sm:$0xff]
    %v397 = vld [vmem:[#allocation6 + $0xd8] sm:$0xff]
    %v398 = vld [vmem:[#allocation6 + $0xe0] sm:$0xff]
    %v399 = vld [vmem:[#allocation6 + $0xe8] sm:$0xff]
    %v400 = vld [vmem:[#allocation6 + $0xf0] sm:$0xff]
    %v401 = vld [vmem:[#allocation6 + $0xf8] sm:$0xff]
    %v402 = vld [vmem:[#allocation6 + $0x100] sm:$0xff]
    %v403 = vld [vmem:[#allocation6 + $0x108] sm:$0xff]
    %v404 = vld [vmem:[#allocation6 + $0x110] sm:$0xff]
    %v405 = vld [vmem:[#allocation6 + $0x118] sm:$0xff]
    %v406 = vld [vmem:[#allocation6 + $0x120] sm:$0xff]
    %v407 = vld [vmem:[#allocation6 + $0x128] sm:$0xff]
    %v408 = vld [vmem:[#allocation6 + $0x130] sm:$0xff]
    %v409 = vld [vmem:[#allocation6 + $0x138] sm:$0xff]
    %v410 = vld [vmem:[#allocation6 + $0x140] sm:$0xff]
    %v411 = vld [vmem:[#allocation6 + $0x148] sm:$0xff]
    %v412 = vld [vmem:[#allocation6 + $0x150] sm:$0xff]
    %v413 = vld [vmem:[#allocation6 + $0x158] sm:$0xff]
    %v414 = vld [vmem:[#allocation6 + $0x160] sm:$0xff]
    %v415 = vld [vmem:[#allocation6 + $0x168] sm:$0xff]
    %v416 = vld [vmem:[#allocation6 + $0x170] sm:$0xff]
    %v417 = vld [vmem:[#allocation6 + $0x178] sm:$0xff]
    %v418 = vld [vmem:[#allocation6 + $0x180] sm:$0xff]
    %v419 = vld [vmem:[#allocation6 + $0x188] sm:$0xff]
    %v420 = vld [vmem:[#allocation6 + $0x190] sm:$0xff]
    %v421 = vld [vmem:[#allocation6 + $0x198] sm:$0xff]
    %v422 = vld [vmem:[#allocation6 + $0x1a0] sm:$0xff]
    %v423 = vld [vmem:[#allocation6 + $0x1a8] sm:$0xff]
    %v424 = vld [vmem:[#allocation6 + $0x1b0] sm:$0xff]
    %v425 = vld [vmem:[#allocation6 + $0x1b8] sm:$0xff]
    %v426 = vld [vmem:[#allocation6 + $0x1c0] sm:$0xff]
    %v427 = vld [vmem:[#allocation6 + $0x1c8] sm:$0xff]
    %v428 = vld [vmem:[#allocation6 + $0x1d0] sm:$0xff]
    %v429 = vld [vmem:[#allocation6 + $0x1d8] sm:$0xff]
    %v430 = vld [vmem:[#allocation6 + $0x1e0] sm:$0xff]
    %v431 = vld [vmem:[#allocation6 + $0x1e8] sm:$0xff]
    %v432 = vld [vmem:[#allocation6 + $0x1f0] sm:$0xff]
    %v433 = vld [vmem:[#allocation6 + $0x1f8] sm:$0xff]
    %v434 = vunpack.c.l.bf16 %v370
    %v435 = vunpack.c.h.bf16 %v370
    %v436 = vunpack.c.l.bf16 %v371
    %v437 = vunpack.c.h.bf16 %v371
    %v438 = vunpack.c.l.bf16 %v372
    %v439 = vunpack.c.h.bf16 %v372
    %v440 = vunpack.c.l.bf16 %v373
    %v441 = vunpack.c.h.bf16 %v373
    %v442 = vunpack.c.l.bf16 %v374
    %v443 = vunpack.c.h.bf16 %v374
    %v444 = vunpack.c.l.bf16 %v375
    %v445 = vunpack.c.h.bf16 %v375
    %v446 = vunpack.c.l.bf16 %v376
    %v447 = vunpack.c.h.bf16 %v376
    %v448 = vunpack.c.l.bf16 %v377
    %v449 = vunpack.c.h.bf16 %v377
    %v450 = vunpack.c.l.bf16 %v378
    %v451 = vunpack.c.h.bf16 %v378
    %v452 = vunpack.c.l.bf16 %v379
    %v453 = vunpack.c.h.bf16 %v379
    %v454 = vunpack.c.l.bf16 %v380
    %v455 = vunpack.c.h.bf16 %v380
    %v456 = vunpack.c.l.bf16 %v381
    %v457 = vunpack.c.h.bf16 %v381
    %v458 = vunpack.c.l.bf16 %v382
    %v459 = vunpack.c.h.bf16 %v382
    %v460 = vunpack.c.l.bf16 %v383
    %v461 = vunpack.c.h.bf16 %v383
    %v462 = vunpack.c.l.bf16 %v384
    %v463 = vunpack.c.h.bf16 %v384
    %v464 = vunpack.c.l.bf16 %v385
    %v465 = vunpack.c.h.bf16 %v385
    %v466 = vunpack.c.l.bf16 %v386
    %v467 = vunpack.c.h.bf16 %v386
    %v468 = vunpack.c.l.bf16 %v387
    %v469 = vunpack.c.h.bf16 %v387
    %v470 = vunpack.c.l.bf16 %v388
    %v471 = vunpack.c.h.bf16 %v388
    %v472 = vunpack.c.l.bf16 %v389
    %v473 = vunpack.c.h.bf16 %v389
    %v474 = vunpack.c.l.bf16 %v390
    %v475 = vunpack.c.h.bf16 %v390
    %v476 = vunpack.c.l.bf16 %v391
    %v477 = vunpack.c.h.bf16 %v391
    %v478 = vunpack.c.l.bf16 %v392
    %v479 = vunpack.c.h.bf16 %v392
    %v480 = vunpack.c.l.bf16 %v393
    %v481 = vunpack.c.h.bf16 %v393
    %v482 = vunpack.c.l.bf16 %v394
    %v483 = vunpack.c.h.bf16 %v394
    %v484 = vunpack.c.l.bf16 %v395
    %v485 = vunpack.c.h.bf16 %v395
    %v486 = vunpack.c.l.bf16 %v396
    %v487 = vunpack.c.h.bf16 %v396
    %v488 = vunpack.c.l.bf16 %v397
    %v489 = vunpack.c.h.bf16 %v397
    %v490 = vunpack.c.l.bf16 %v398
    %v491 = vunpack.c.h.bf16 %v398
    %v492 = vunpack.c.l.bf16 %v399
    %v493 = vunpack.c.h.bf16 %v399
    %v494 = vunpack.c.l.bf16 %v400
    %v495 = vunpack.c.h.bf16 %v400
    %v496 = vunpack.c.l.bf16 %v401
    %v497 = vunpack.c.h.bf16 %v401
    %v498 = vunpack.c.l.bf16 %v402
    %v499 = vunpack.c.h.bf16 %v402
    %v500 = vunpack.c.l.bf16 %v403
    %v501 = vunpack.c.h.bf16 %v403
    %v502 = vunpack.c.l.bf16 %v404
    %v503 = vunpack.c.h.bf16 %v404
    %v504 = vunpack.c.l.bf16 %v405
    %v505 = vunpack.c.h.bf16 %v405
    %v506 = vunpack.c.l.bf16 %v406
    %v507 = vunpack.c.h.bf16 %v406
    %v508 = vunpack.c.l.bf16 %v407
    %v509 = vunpack.c.h.bf16 %v407
    %v510 = vunpack.c.l.bf16 %v408
    %v511 = vunpack.c.h.bf16 %v408
    %v512 = vunpack.c.l.bf16 %v409
    %v513 = vunpack.c.h.bf16 %v409
    %v514 = vunpack.c.l.bf16 %v410
    %v515 = vunpack.c.h.bf16 %v410
    %v516 = vunpack.c.l.bf16 %v411
    %v517 = vunpack.c.h.bf16 %v411
    %v518 = vunpack.c.l.bf16 %v412
    %v519 = vunpack.c.h.bf16 %v412
    %v520 = vunpack.c.l.bf16 %v413
    %v521 = vunpack.c.h.bf16 %v413
    %v522 = vunpack.c.l.bf16 %v414
    %v523 = vunpack.c.h.bf16 %v414
    %v524 = vunpack.c.l.bf16 %v415
    %v525 = vunpack.c.h.bf16 %v415
    %v526 = vunpack.c.l.bf16 %v416
    %v527 = vunpack.c.h.bf16 %v416
    %v528 = vunpack.c.l.bf16 %v417
    %v529 = vunpack.c.h.bf16 %v417
    %v530 = vunpack.c.l.bf16 %v418
    %v531 = vunpack.c.h.bf16 %v418
    %v532 = vunpack.c.l.bf16 %v419
    %v533 = vunpack.c.h.bf16 %v419
    %v534 = vunpack.c.l.bf16 %v420
    %v535 = vunpack.c.h.bf16 %v420
    %v536 = vunpack.c.l.bf16 %v421
    %v537 = vunpack.c.h.bf16 %v421
    %v538 = vunpack.c.l.bf16 %v422
    %v539 = vunpack.c.h.bf16 %v422
    %v540 = vunpack.c.l.bf16 %v423
    %v541 = vunpack.c.h.bf16 %v423
    %v542 = vunpack.c.l.bf16 %v424
    %v543 = vunpack.c.h.bf16 %v424
    %v544 = vunpack.c.l.bf16 %v425
    %v545 = vunpack.c.h.bf16 %v425
    %v546 = vunpack.c.l.bf16 %v426
    %v547 = vunpack.c.h.bf16 %v426
    %v548 = vunpack.c.l.bf16 %v427
    %v549 = vunpack.c.h.bf16 %v427
    %v550 = vunpack.c.l.bf16 %v428
    %v551 = vunpack.c.h.bf16 %v428
    %v552 = vunpack.c.l.bf16 %v429
    %v553 = vunpack.c.h.bf16 %v429
    %v554 = vunpack.c.l.bf16 %v430
    %v555 = vunpack.c.h.bf16 %v430
    %v556 = vunpack.c.l.bf16 %v431
    %v557 = vunpack.c.h.bf16 %v431
    %v558 = vunpack.c.l.bf16 %v432
    %v559 = vunpack.c.h.bf16 %v432
    %v560 = vunpack.c.l.bf16 %v433
    %v561 = vunpack.c.h.bf16 %v433
    %562 = vmatprep.subr.mxu0 %v435
    %563 = vmatpush1.msra.mxu0 %v434
    %564 = vmatprep.subr.mxu0 %v439
    %565 = vmatpush1.msra.mxu0 %v438
    %566 = vmatprep.subr.mxu0 %v443
    %567 = vmatpush1.msra.mxu0 %v442
    %568 = vmatprep.subr.mxu0 %v447
    %569 = vmatpush1.msra.mxu0 %v446
    %570 = vmatprep.subr.mxu0 %v451
    %571 = vmatpush1.msra.mxu0 %v450
    %572 = vmatprep.subr.mxu0 %v455
    %573 = vmatpush1.msra.mxu0 %v454
    %574 = vmatprep.subr.mxu0 %v459
    %575 = vmatpush1.msra.mxu0 %v458
    %576 = vmatprep.subr.mxu0 %v463
    %577 = vmatpush1.msra.mxu0 %v462
    %578 = vmatprep.subr.mxu0 %v467
    %579 = vmatpush1.msra.mxu0 %v466
    %580 = vmatprep.subr.mxu0 %v471
    %581 = vmatpush1.msra.mxu0 %v470
    %582 = vmatprep.subr.mxu0 %v475
    %583 = vmatpush1.msra.mxu0 %v474
    %584 = vmatprep.subr.mxu0 %v479
    %585 = vmatpush1.msra.mxu0 %v478
    %586 = vmatprep.subr.mxu0 %v483
    %587 = vmatpush1.msra.mxu0 %v482
    %588 = vmatprep.subr.mxu0 %v487
    %589 = vmatpush1.msra.mxu0 %v486
    %590 = vmatprep.subr.mxu0 %v491
    %591 = vmatpush1.msra.mxu0 %v490
    %592 = vmatprep.subr.mxu0 %v495
    %593 = vmatpush1.msra.mxu0 %v494
    %594 = vmatprep.subr.mxu0 %v499
    %595 = vmatpush1.msra.mxu0 %v498
    %596 = vmatprep.subr.mxu0 %v503
    %597 = vmatpush1.msra.mxu0 %v502
    %598 = vmatprep.subr.mxu0 %v507
    %599 = vmatpush1.msra.mxu0 %v506
    %600 = vmatprep.subr.mxu0 %v511
    %601 = vmatpush1.msra.mxu0 %v510
    %602 = vmatprep.subr.mxu0 %v515
    %603 = vmatpush1.msra.mxu0 %v514
    %604 = vmatprep.subr.mxu0 %v519
    %605 = vmatpush1.msra.mxu0 %v518
    %606 = vmatprep.subr.mxu0 %v523
    %607 = vmatpush1.msra.mxu0 %v522
    %608 = vmatprep.subr.mxu0 %v527
    %609 = vmatpush1.msra.mxu0 %v526
    %610 = vmatprep.subr.mxu0 %v531
    %611 = vmatpush1.msra.mxu0 %v530
    %612 = vmatprep.subr.mxu0 %v535
    %613 = vmatpush1.msra.mxu0 %v534
    %614 = vmatprep.subr.mxu0 %v539
    %615 = vmatpush1.msra.mxu0 %v538
    %616 = vmatprep.subr.mxu0 %v543
    %617 = vmatpush1.msra.mxu0 %v542
    %618 = vmatprep.subr.mxu0 %v547
    %619 = vmatpush1.msra.mxu0 %v546
    %620 = vmatprep.subr.mxu0 %v551
    %621 = vmatpush1.msra.mxu0 %v550
    %622 = vmatprep.subr.mxu0 %v555
    %623 = vmatpush1.msra.mxu0 %v554
    %624 = vmatprep.subr.mxu0 %v559
    %625 = vmatpush1.msra.mxu0 %v558
    %626 = vmatprep.mubr.f32.mxu0 %v369
    %627 = vmatmul.mubr.f32.gmra.mrb[0].mxu0 %v368
    %v628 = vpop.f32.mrb[0].mxu0
    %v629 = vadd.f32 0.0, %v628
    %v630 = vpop.f32.mrb[0].mxu0
    %v631 = vadd.f32 0.0, %v630
    %632 = vdwg.mxu0
    %633 = vmatprep.subr.mxu0 %v437
    %634 = vmatpush1.msra.mxu0 %v436
    %635 = vmatprep.subr.mxu0 %v441
    %636 = vmatpush1.msra.mxu0 %v440
    %637 = vmatprep.subr.mxu0 %v445
    %638 = vmatpush1.msra.mxu0 %v444
    %639 = vmatprep.subr.mxu0 %v449
    %640 = vmatpush1.msra.mxu0 %v448
    %641 = vmatprep.subr.mxu0 %v453
    %642 = vmatpush1.msra.mxu0 %v452
    %643 = vmatprep.subr.mxu0 %v457
    %644 = vmatpush1.msra.mxu0 %v456
    %645 = vmatprep.subr.mxu0 %v461
    %646 = vmatpush1.msra.mxu0 %v460
    %647 = vmatprep.subr.mxu0 %v465
    %648 = vmatpush1.msra.mxu0 %v464
    %649 = vmatprep.subr.mxu0 %v469
    %650 = vmatpush1.msra.mxu0 %v468
    %651 = vmatprep.subr.mxu0 %v473
    %652 = vmatpush1.msra.mxu0 %v472
    %653 = vmatprep.subr.mxu0 %v477
    %654 = vmatpush1.msra.mxu0 %v476
    %655 = vmatprep.subr.mxu0 %v481
    %656 = vmatpush1.msra.mxu0 %v480
    %657 = vmatprep.subr.mxu0 %v485
    %658 = vmatpush1.msra.mxu0 %v484
    %659 = vmatprep.subr.mxu0 %v489
    %660 = vmatpush1.msra.mxu0 %v488
    %661 = vmatprep.subr.mxu0 %v493
    %662 = vmatpush1.msra.mxu0 %v492
    %663 = vmatprep.subr.mxu0 %v497
    %664 = vmatpush1.msra.mxu0 %v496
    %665 = vmatprep.subr.mxu0 %v501
    %666 = vmatpush1.msra.mxu0 %v500
    %667 = vmatprep.subr.mxu0 %v505
    %668 = vmatpush1.msra.mxu0 %v504
    %669 = vmatprep.subr.mxu0 %v509
    %670 = vmatpush1.msra.mxu0 %v508
    %671 = vmatprep.subr.mxu0 %v513
    %672 = vmatpush1.msra.mxu0 %v512
    %673 = vmatprep.subr.mxu0 %v517
    %674 = vmatpush1.msra.mxu0 %v516
    %675 = vmatprep.subr.mxu0 %v521
    %676 = vmatpush1.msra.mxu0 %v520
    %677 = vmatprep.subr.mxu0 %v525
    %678 = vmatpush1.msra.mxu0 %v524
    %679 = vmatprep.subr.mxu0 %v529
    %680 = vmatpush1.msra.mxu0 %v528
    %681 = vmatprep.subr.mxu0 %v533
    %682 = vmatpush1.msra.mxu0 %v532
    %683 = vmatprep.subr.mxu0 %v537
    %684 = vmatpush1.msra.mxu0 %v536
    %685 = vmatprep.subr.mxu0 %v541
    %686 = vmatpush1.msra.mxu0 %v540
    %687 = vmatprep.subr.mxu0 %v545
    %688 = vmatpush1.msra.mxu0 %v544
    %689 = vmatprep.subr.mxu0 %v549
    %690 = vmatpush1.msra.mxu0 %v548
    %691 = vmatprep.subr.mxu0 %v553
    %692 = vmatpush1.msra.mxu0 %v552
    %693 = vmatprep.subr.mxu0 %v557
    %694 = vmatpush1.msra.mxu0 %v556
    %695 = vmatprep.subr.mxu0 %v561
    %696 = vmatpush1.msra.mxu0 %v560
    %697 = vmatprep.mubr.f32.mxu0 %v369
    %698 = vmatmul.mubr.f32.gmra.mrb[0].mxu0 %v368
    %v699 = vpop.f32.mrb[0].mxu0
    %v700 = vadd.f32 0.0, %v699
    %v701 = vpop.f32.mrb[0].mxu0
    %v702 = vadd.f32 0.0, %v701
    %703 = vdwg.mxu0
    %v704 = vld [vmem:[%s7] ss:$8 sm:$0x3]
    %v706 = vlaneseq
    %v707 = vshrl.u32 %v706, 7
    %v708 = vsub.s32 0, %v707
    %v709 = vrot.slane %v704, %v708
    %v710 = vlaneseq
    %v711 = vshrl.u32 %v710, 7
    %v712 = vsub.s32 1, %v711
    %v713 = vrot.slane %v704, %v712
    %v716 = vadd.f32 %v629, %v709
    %v717 = vadd.f32 %v631, %v713
    %s718 = scalar_lea.vmem %s7, 2
    %v719 = vld [vmem:[%s718] ss:$8 sm:$0x3]
    %s720 = scalar_lea.vmem %s7, 4
    %v721 = vld [vmem:[%s720] ss:$8 sm:$0x3]
    %v722 = vsel %vm191, %v716, 0.0
    %v723 = vsel %vm191, %v717, 0.0
    %v724 = vadd.f32 %v722, %v723
    %725 = vadd.xlane.f32.xlu0 %v724
    %v726 = vpop.xlane.xlu0 %725
    %v727 = vrcp.pop 256.0
    %v728 = vmul.f32 %v726, %v727
    %v729 = vsub.f32 %v716, %v728
    %v730 = vsub.f32 %v717, %v728
    %v731 = vmul.f32 %v729, %v729
    %v732 = vmul.f32 %v730, %v730
    %v733 = vsel %vm191, %v731, 0.0
    %v734 = vsel %vm191, %v732, 0.0
    %v735 = vadd.f32 %v733, %v734
    %736 = vadd.xlane.f32.xlu0 %v735
    %v737 = vpop.xlane.xlu0 %736
    %v738 = vmul.f32 %v737, %v727
    %v739 = vadd.f32 %v738, 1e-05
    %v740 = vrsqrt.pop %v739
    %v741 = vmul.f32 %v729, %v740
    %v742 = vmul.f32 %v730, %v740
    %v744 = vlaneseq
    %v745 = vshrl.u32 %v744, 7
    %v746 = vsub.s32 0, %v745
    %v747 = vrot.slane %v719, %v746
    %v748 = vlaneseq
    %v749 = vshrl.u32 %v748, 7
    %v750 = vsub.s32 1, %v749
    %v751 = vrot.slane %v719, %v750
    %v754 = vmul.f32 %v741, %v747
    %v755 = vmul.f32 %v742, %v751
    %v757 = vlaneseq
    %v758 = vshrl.u32 %v757, 7
    %v759 = vsub.s32 0, %v758
    %v760 = vrot.slane %v721, %v759
    %v761 = vlaneseq
    %v762 = vshrl.u32 %v761, 7
    %v763 = vsub.s32 1, %v762
    %v764 = vrot.slane %v721, %v763
    %v767 = vadd.f32 %v754, %v760
    %v768 = vadd.f32 %v755, %v764
    %s769 = scalar_lea.vmem %s7, 1
    %v770 = vld [vmem:[%s769] ss:$8 sm:$0x3]
    %v772 = vlaneseq
    %v773 = vshrl.u32 %v772, 7
    %v774 = vsub.s32 0, %v773
    %v775 = vrot.slane %v770, %v774
    %v776 = vlaneseq
    %v777 = vshrl.u32 %v776, 7
    %v778 = vsub.s32 1, %v777
    %v779 = vrot.slane %v770, %v778
    %v782 = vadd.f32 %v700, %v775
    %v783 = vadd.f32 %v702, %v779
    %s784 = scalar_lea.vmem %s7, 3
    %v785 = vld [vmem:[%s784] ss:$8 sm:$0x3]
    %s786 = scalar_lea.vmem %s7, 5
    %v787 = vld [vmem:[%s786] ss:$8 sm:$0x3]
    %v788 = vsel %vm336, %v782, 0.0
    %v789 = vsel %vm336, %v783, 0.0
    %v790 = vadd.f32 %v788, %v789
    %791 = vadd.xlane.f32.xlu0 %v790
    %v792 = vpop.xlane.xlu0 %791
    %v793 = vmul.f32 %v792, %v727
    %v794 = vsub.f32 %v782, %v793
    %v795 = vsub.f32 %v783, %v793
    %v796 = vmul.f32 %v794, %v794
    %v797 = vmul.f32 %v795, %v795
    %v798 = vsel %vm336, %v796, 0.0
    %v799 = vsel %vm336, %v797, 0.0
    %v800 = vadd.f32 %v798, %v799
    %801 = vadd.xlane.f32.xlu0 %v800
    %v802 = vpop.xlane.xlu0 %801
    %v803 = vmul.f32 %v802, %v727
    %v804 = vadd.f32 %v803, 1e-05
    %v805 = vrsqrt.pop %v804
    %v806 = vmul.f32 %v794, %v805
    %v807 = vmul.f32 %v795, %v805
    %v809 = vlaneseq
    %v810 = vshrl.u32 %v809, 7
    %v811 = vsub.s32 0, %v810
    %v812 = vrot.slane %v785, %v811
    %v813 = vlaneseq
    %v814 = vshrl.u32 %v813, 7
    %v815 = vsub.s32 1, %v814
    %v816 = vrot.slane %v785, %v815
    %v819 = vmul.f32 %v806, %v812
    %v820 = vmul.f32 %v807, %v816
    %v822 = vlaneseq
    %v823 = vshrl.u32 %v822, 7
    %v824 = vsub.s32 0, %v823
    %v825 = vrot.slane %v787, %v824
    %v826 = vlaneseq
    %v827 = vshrl.u32 %v826, 7
    %v828 = vsub.s32 1, %v827
    %v829 = vrot.slane %v787, %v828
    %v832 = vadd.f32 %v819, %v825
    %v833 = vadd.f32 %v820, %v829
    %v834 = vsel %vm191, %v767, %v832
    %v835 = vsel %vm191, %v768, %v833
    %v836 = vld [vmem:[#allocation7] sm:$0xf]
    %v837 = vld [vmem:[#allocation7 + $0x4] sm:$0xf]
    %v838 = vld [vmem:[#allocation7 + $0x8] sm:$0xf]
    %v839 = vld [vmem:[#allocation7 + $0xc] sm:$0xf]
    %v840 = vld [vmem:[#allocation7 + $0x10] sm:$0xf]
    %v841 = vld [vmem:[#allocation7 + $0x14] sm:$0xf]
    %v842 = vld [vmem:[#allocation7 + $0x18] sm:$0xf]
    %v843 = vld [vmem:[#allocation7 + $0x1c] sm:$0xf]
    %v844 = vld [vmem:[#allocation7 + $0x20] sm:$0xf]
    %v845 = vld [vmem:[#allocation7 + $0x24] sm:$0xf]
    %v846 = vld [vmem:[#allocation7 + $0x28] sm:$0xf]
    %v847 = vld [vmem:[#allocation7 + $0x2c] sm:$0xf]
    %v848 = vld [vmem:[#allocation7 + $0x30] sm:$0xf]
    %v849 = vld [vmem:[#allocation7 + $0x34] sm:$0xf]
    %v850 = vld [vmem:[#allocation7 + $0x38] sm:$0xf]
    %v851 = vld [vmem:[#allocation7 + $0x3c] sm:$0xf]
    %v852 = vld [vmem:[#allocation7 + $0x40] sm:$0xf]
    %v853 = vld [vmem:[#allocation7 + $0x44] sm:$0xf]
    %v854 = vld [vmem:[#allocation7 + $0x48] sm:$0xf]
    %v855 = vld [vmem:[#allocation7 + $0x4c] sm:$0xf]
    %v856 = vld [vmem:[#allocation7 + $0x50] sm:$0xf]
    %v857 = vld [vmem:[#allocation7 + $0x54] sm:$0xf]
    %v858 = vld [vmem:[#allocation7 + $0x58] sm:$0xf]
    %v859 = vld [vmem:[#allocation7 + $0x5c] sm:$0xf]
    %v860 = vld [vmem:[#allocation7 + $0x60] sm:$0xf]
    %v861 = vld [vmem:[#allocation7 + $0x64] sm:$0xf]
    %v862 = vld [vmem:[#allocation7 + $0x68] sm:$0xf]
    %v863 = vld [vmem:[#allocation7 + $0x6c] sm:$0xf]
    %v864 = vld [vmem:[#allocation7 + $0x70] sm:$0xf]
    %v865 = vld [vmem:[#allocation7 + $0x74] sm:$0xf]
    %v866 = vld [vmem:[#allocation7 + $0x78] sm:$0xf]
    %v867 = vld [vmem:[#allocation7 + $0x7c] sm:$0xf]
    %v868 = vunpack.c.l.bf16 %v836
    %v869 = vunpack.c.l.bf16 %v837
    %v870 = vunpack.c.l.bf16 %v838
    %v871 = vunpack.c.l.bf16 %v839
    %v872 = vunpack.c.l.bf16 %v840
    %v873 = vunpack.c.l.bf16 %v841
    %v874 = vunpack.c.l.bf16 %v842
    %v875 = vunpack.c.l.bf16 %v843
    %v876 = vunpack.c.l.bf16 %v844
    %v877 = vunpack.c.l.bf16 %v845
    %v878 = vunpack.c.l.bf16 %v846
    %v879 = vunpack.c.l.bf16 %v847
    %v880 = vunpack.c.l.bf16 %v848
    %v881 = vunpack.c.l.bf16 %v849
    %v882 = vunpack.c.l.bf16 %v850
    %v883 = vunpack.c.l.bf16 %v851
    %v884 = vunpack.c.l.bf16 %v852
    %v885 = vunpack.c.l.bf16 %v853
    %v886 = vunpack.c.l.bf16 %v854
    %v887 = vunpack.c.l.bf16 %v855
    %v888 = vunpack.c.l.bf16 %v856
    %v889 = vunpack.c.l.bf16 %v857
    %v890 = vunpack.c.l.bf16 %v858
    %v891 = vunpack.c.l.bf16 %v859
    %v892 = vunpack.c.l.bf16 %v860
    %v893 = vunpack.c.l.bf16 %v861
    %v894 = vunpack.c.l.bf16 %v862
    %v895 = vunpack.c.l.bf16 %v863
    %v896 = vunpack.c.l.bf16 %v864
    %v897 = vunpack.c.l.bf16 %v865
    %v898 = vunpack.c.l.bf16 %v866
    %v899 = vunpack.c.l.bf16 %v867
    %v900 = vld [vmem:[%s7 + $0x16] ss:$0 sm:$0xff]
    %901 = vmatprep.subr.mxu0 0.0
    %902 = vmatpush1.msra.mxu0 %v868
    %903 = vmatprep.subr.mxu0 0.0
    %904 = vmatpush1.msra.mxu0 %v869
    %905 = vmatprep.subr.mxu0 0.0
    %906 = vmatpush1.msra.mxu0 %v870
    %907 = vmatprep.subr.mxu0 0.0
    %908 = vmatpush1.msra.mxu0 %v871
    %909 = vmatprep.subr.mxu0 0.0
    %910 = vmatpush1.msra.mxu0 %v872
    %911 = vmatprep.subr.mxu0 0.0
    %912 = vmatpush1.msra.mxu0 %v873
    %913 = vmatprep.subr.mxu0 0.0
    %914 = vmatpush1.msra.mxu0 %v874
    %915 = vmatprep.subr.mxu0 0.0
    %916 = vmatpush1.msra.mxu0 %v875
    %917 = vmatprep.subr.mxu0 0.0
    %918 = vmatpush1.msra.mxu0 %v876
    %919 = vmatprep.subr.mxu0 0.0
    %920 = vmatpush1.msra.mxu0 %v877
    %921 = vmatprep.subr.mxu0 0.0
    %922 = vmatpush1.msra.mxu0 %v878
    %923 = vmatprep.subr.mxu0 0.0
    %924 = vmatpush1.msra.mxu0 %v879
    %925 = vmatprep.subr.mxu0 0.0
    %926 = vmatpush1.msra.mxu0 %v880
    %927 = vmatprep.subr.mxu0 0.0
    %928 = vmatpush1.msra.mxu0 %v881
    %929 = vmatprep.subr.mxu0 0.0
    %930 = vmatpush1.msra.mxu0 %v882
    %931 = vmatprep.subr.mxu0 0.0
    %932 = vmatpush1.msra.mxu0 %v883
    %933 = vmatprep.subr.mxu0 0.0
    %934 = vmatpush1.msra.mxu0 %v884
    %935 = vmatprep.subr.mxu0 0.0
    %936 = vmatpush1.msra.mxu0 %v885
    %937 = vmatprep.subr.mxu0 0.0
    %938 = vmatpush1.msra.mxu0 %v886
    %939 = vmatprep.subr.mxu0 0.0
    %940 = vmatpush1.msra.mxu0 %v887
    %941 = vmatprep.subr.mxu0 0.0
    %942 = vmatpush1.msra.mxu0 %v888
    %943 = vmatprep.subr.mxu0 0.0
    %944 = vmatpush1.msra.mxu0 %v889
    %945 = vmatprep.subr.mxu0 0.0
    %946 = vmatpush1.msra.mxu0 %v890
    %947 = vmatprep.subr.mxu0 0.0
    %948 = vmatpush1.msra.mxu0 %v891
    %949 = vmatprep.subr.mxu0 0.0
    %950 = vmatpush1.msra.mxu0 %v892
    %951 = vmatprep.subr.mxu0 0.0
    %952 = vmatpush1.msra.mxu0 %v893
    %953 = vmatprep.subr.mxu0 0.0
    %954 = vmatpush1.msra.mxu0 %v894
    %955 = vmatprep.subr.mxu0 0.0
    %956 = vmatpush1.msra.mxu0 %v895
    %957 = vmatprep.subr.mxu0 0.0
    %958 = vmatpush1.msra.mxu0 %v896
    %959 = vmatprep.subr.mxu0 0.0
    %960 = vmatpush1.msra.mxu0 %v897
    %961 = vmatprep.subr.mxu0 0.0
    %962 = vmatpush1.msra.mxu0 %v898
    %963 = vmatprep.subr.mxu0 0.0
    %964 = vmatpush1.msra.mxu0 %v899
    %965 = vmatprep.mubr.f32.mxu0 %v835
    %966 = vmatmul.mubr.f32.gmra.mrb[0].mxu0 %v834
    %v967 = vpop.f32.mrb[0].mxu0
    %v968 = vadd.f32 %v900, %v967
    %v969 = vpop.f32.mrb[0].mxu0
    %970 = vdwg.mxu0
    %v971 = vsel %vm191, %v331, %v351
    %v972 = vsub.f32 %v971, %v968
    %v973 = vmul.f32 %v972, %v972
    %vm974 = vcmask 1043456
    %v975 = vsel %vm974, %v973, 0.0
    %976 = vadd.xlane.f32.xlu0 %v975
    %v977 = vpop.xlane.xlu0 %976
    %vm978 = vcmask 1024
    %v979 = vsel %vm978, %v977, 0.0
    %980 = vadd.xlane.f32.xlu0 %v979
    %v981 = vpop.xlane.xlu0 %980
    %v982 = vrot.slane %v981, 4
    %v983 = vadd.f32 %v981, %v982
    %v984 = vrot.slane %v983, 2
    %v985 = vadd.f32 %v983, %v984
    %v986 = vrot.slane %v985, 1
    %v987 = vadd.f32 %v985, %v986
    %s988 = vtos %v987
    %s989 = smul.f32 %s988, 0.00390625
    %v991 = vrot.slane %v977, 2
    %v993 = vsel %vm978, %v991, 0.0
    %994 = vadd.xlane.f32.xlu0 %v993
    %v995 = vpop.xlane.xlu0 %994
    %v996 = vrot.slane %v995, 4
    %v997 = vadd.f32 %v995, %v996
    %v998 = vrot.slane %v997, 2
    %v999 = vadd.f32 %v997, %v998
    %v1000 = vrot.slane %v999, 1
    %v1001 = vadd.f32 %v999, %v1000
    %s1002 = vtos %v1001
    %s1003 = smul.f32 %s1002, 0.00390625
    %v1004 = vlaneseq
    %v1005 = vand.u32 %v1004, 127
    %vm1006 = vcmp.eq.s32.totalorder %v1005, 0
    %vm1007 = vcmp.eq.s32.totalorder %v1005, 1
    %v1008 = vstv %s1003
    %v1009 = vsel %vm1007, %v1008, 0.0
    %v1010 = vstv %s989
    %v1011 = vsel %vm1006, %v1010, %v1009
    %1012 = vst [vmem:[%s8] sm:$0x1] %v1011
    // Predicated region
    $region50: #{alignment_forward.1} parent=1 // pred_check
      _
    $region51: #{alignment_forward.1} parent=1 // pred_check_branch
      %1014 = sbr.rel (0) target = $region53
    $region52: #{alignment_forward.1} parent=1 // pred_region
      _
    $region53: #{alignment_forward.1} parent=1 // pred_fallthru
      _
    // Predicated region
    $region54: #{alignment_forward.1} parent=1 // pred_check
      _
    $region55: #{alignment_forward.1} parent=1 // pred_check_branch
      %1016 = sbr.rel (0) target = $region57
    $region56: #{alignment_forward.1} parent=1 // pred_region
      _
    $region57: #{alignment_forward.1} parent=1 // pred_fallthru
      _
    %1017 = vsyncpa [#allocation3], 1
    %1018 = vsyncpa [#allocation5], 1
    %1019 = vsyncpa [#allocation8], 1

</llo_original>
